<compile_context>
chip_gen: v5e
topology: v5e:2x2
jax: 0.10.0
libtpu: 0.0.40
codegen_flags: <defaults>
</compile_context>

<pallas_src>
import functools

import jax
import jax.numpy as jnp
from jax.experimental import pallas as pl
from jax.experimental.pallas import tpu as pltpu

IGNORE_INDEX = -100  # deterministic "parameter" of the module __init__

# Leading grid axis, marked "parallel" so megacore chips (v7x: 2 TC/chip) split
# the row range across TensorCores.  On single-core chips (v5e/v6e) the extra
# segment is just one more short serial pipeline chunk — negligible overhead.
# TODO(synk): query the actual TensorCore count instead of assuming 2.
_DEFAULT_NUM_PARTITIONS = 2
_LANES = 128


def _vmem_capacity_bytes():
    try:
        return int(pltpu.get_tpu_info().vmem_capacity_bytes)
    except Exception:
        return 64 * 1024 * 1024  # conservative fallback: v7x per-core VMEM


def _pick_tile_n(n_rows, n_classes, itemsize, vmem_capacity):
    """Largest row tile whose full VMEM working set fits the budget."""
    sub = 8 * max(1, 4 // itemsize)          # 8 rows for f32, 16 for bf16
    # Per-row footprint: double-buffered native-dtype logits + f32 upcast +
    # exp() temporary (both f32) + double-buffered int32 target column.
    bytes_per_row = n_classes * (2 * itemsize + 8) + 8
    budget = min(vmem_capacity // 3, 32 * 1024 * 1024)
    rows = max(sub, (budget // bytes_per_row) // sub * sub)
    needed = -(-n_rows // sub) * sub         # don't over-allocate tiny inputs
    return int(min(rows, max(needed, sub)))


def _ce_kernel(preds_ref, tgt_ref, sum_ref, cnt_ref, *, ignore_index, n_rows,
               tile_n, tiles_per_core, n_full_tiles, need_fast, need_tail):
    """Per-tile cross-entropy partial reduction.

    preds_ref: (TN, C) logits tile (native dtype, upcast to f32 here)
    tgt_ref:   (TN, 1) int32 class indices tile
    sum_ref:   (1, 128) f32 output chunk owned by this partition: running loss sum
    cnt_ref:   (1, 128) f32 output chunk owned by this partition: running valid count
    """
    core = pl.program_id(0)                  # row-partition ("parallel") index
    tile = pl.program_id(1)                  # row-tile within the partition
    logical_tile = core * tiles_per_core + tile

    @pl.when(tile == 0)
    def _init():
        sum_ref[...] = jnp.zeros_like(sum_ref)
        cnt_ref[...] = jnp.zeros_like(cnt_ref)

    x = preds_ref[...].astype(jnp.float32)   # (TN, C) upcast on the VMEM tile
    t = tgt_ref[...]                         # (TN, 1) int32

    # Numerically-stable log-sum-exp per row.
    m = jnp.max(x, axis=-1, keepdims=True)                            # (TN, 1)
    lse = jnp.log(jnp.sum(jnp.exp(x - m), axis=-1, keepdims=True)) + m

    # Select the logit at the target index.  The column iota is (1, C) and is
    # broadcast by the compare — no full-tile int32 iota tensor.
    col = jax.lax.broadcasted_iota(jnp.int32, (1, x.shape[-1]), 1)
    tgt_logit = jnp.sum(jnp.where(col == t, x, 0.0), axis=-1, keepdims=True)

    # ignore_index never matches any column; jnp.where is a select, so any
    # NaN/inf produced by garbage padding rows never propagates.
    valid = t != ignore_index                                         # (TN, 1)
    per_row = jnp.where(valid, lse - tgt_logit, 0.0)                  # (TN, 1)
    per_cnt = valid.astype(jnp.float32)

    def _accumulate(row_mask=None):
        pr, pc = per_row, per_cnt
        if row_mask is not None:
            pr = jnp.where(row_mask, pr, 0.0)
            pc = jnp.where(row_mask, pc, 0.0)
        # Single XLU reduce to (1, 1), then one lane-dense broadcast-add into
        # the resident output block.  (f32 count is exact up to 2^24 rows.)
        sum_ref[...] += jnp.sum(pr, keepdims=True)
        cnt_ref[...] += jnp.sum(pc, keepdims=True)

    def _tail_mask():
        row_ids = logical_tile * tile_n + jax.lax.broadcasted_iota(
            jnp.int32, (tile_n, 1), 0)
        return row_ids < n_rows

    if need_fast and need_tail:
        # Only the tail / clamped out-of-range tiles pay for the row-id mask.
        pl.when(logical_tile < n_full_tiles)(_accumulate)
        pl.when(logical_tile >= n_full_tiles)(lambda: _accumulate(_tail_mask()))
    elif need_tail:
        _accumulate(_tail_mask())
    else:
        _accumulate()


def cross_entropy_loss(preds, target, ignore_index=IGNORE_INDEX, *,
                       tile_n=None, num_partitions=None):
    """preds: (..., C) floats (any float dtype); target: (...) ints. Scalar mean loss."""
    C = preds.shape[-1]
    preds2d = preds.reshape(-1, C)                 # native dtype: no HBM upcast copy
    tgt2d = target.reshape(-1, 1).astype(jnp.int32)
    N = preds2d.shape[0]
    itemsize = preds2d.dtype.itemsize

    vmem_cap = _vmem_capacity_bytes()
    if tile_n is None:
        tile_n = _pick_tile_n(N, C, itemsize, vmem_cap)
    n_tiles = -(-N // tile_n)                      # cdiv; no row padding needed

    if num_partitions is None:
        num_partitions = _DEFAULT_NUM_PARTITIONS
    num_partitions = max(1, min(int(num_partitions), n_tiles))
    tiles_per_core = -(-n_tiles // num_partitions)

    n_full_tiles = N // tile_n                     # tiles with no padded rows
    need_fast = n_full_tiles > 0
    # Tail masking is needed for a partial last tile and for the clamped
    # out-of-range tiles created when n_tiles doesn't divide evenly.
    need_tail = (N % tile_n != 0) or (num_partitions * tiles_per_core > n_tiles)

    # Derive the scoped-VMEM limit from the actual working set (double-buffered
    # native logits + f32 upcast/exp temporaries) instead of a hard-coded value.
    bytes_per_row = C * (2 * itemsize + 8) + 8
    vmem_limit = int(min(vmem_cap,
                         max(tile_n * bytes_per_row + (8 << 20), 32 << 20)))

    # TODO(synk): for vocab-scale C (>= ~16k), add a C grid axis (or in-kernel
    #             C chunking of the upcast) with online-logsumexp scratch so
    #             tile_n stays large and the f32 working set stays bounded.

    kernel = functools.partial(
        _ce_kernel, ignore_index=ignore_index, n_rows=N, tile_n=tile_n,
        tiles_per_core=tiles_per_core, n_full_tiles=n_full_tiles,
        need_fast=need_fast, need_tail=need_tail)

    def _in_map(c, i):
        # Clamp so the (possibly) padded last partition never indexes past the
        # array; clamped tiles are fully masked in-kernel via logical row ids.
        return (jnp.minimum(c * tiles_per_core + i, n_tiles - 1), 0)

    cost = pl.CostEstimate(
        flops=int(5 * N * C),
        transcendentals=int(N * C),
        bytes_accessed=int(N * C * itemsize + N * 4
                           + 2 * num_partitions * _LANES * 4),
    )

    sums, cnts = pl.pallas_call(
        kernel,
        out_shape=(
            jax.ShapeDtypeStruct((1, num_partitions * _LANES), jnp.float32),
            jax.ShapeDtypeStruct((1, num_partitions * _LANES), jnp.float32),
        ),
        grid_spec=pltpu.PrefetchScalarGridSpec(
            num_scalar_prefetch=0,
            grid=(num_partitions, tiles_per_core),
            in_specs=[
                pl.BlockSpec((tile_n, C), _in_map),
                pl.BlockSpec((tile_n, 1), _in_map),
            ],
            out_specs=[
                pl.BlockSpec((1, _LANES), lambda c, i: (0, c)),
                pl.BlockSpec((1, _LANES), lambda c, i: (0, c)),
            ],
        ),
        compiler_params=pltpu.CompilerParams(
            dimension_semantics=("parallel", "arbitrary"),
            vmem_limit_bytes=vmem_limit,
        ),
        cost_estimate=cost,
    )(preds2d, tgt2d)

    # Every lane inside a partition's 128-lane chunk holds the same partial;
    # reduce the per-partition partials in the wrapper.
    loss_sum = jnp.sum(sums.reshape(num_partitions, _LANES)[:, 0])
    loss_cnt = jnp.sum(cnts.reshape(num_partitions, _LANES)[:, 0])
    # mean over valid rows (NaN when every target is ignored — matches PyTorch)
    return loss_sum / loss_cnt


def _reference(preds, target, ignore_index=IGNORE_INDEX):
    preds2d = preds.reshape(-1, preds.shape[-1]).astype(jnp.float32)
    tgt = target.reshape(-1)
    lse = jax.scipy.special.logsumexp(preds2d, axis=-1)
    picked = jnp.take_along_axis(preds2d, jnp.clip(tgt, 0)[:, None], axis=-1)[:, 0]
    valid = (tgt != ignore_index).astype(jnp.float32)
    return jnp.sum((lse - picked) * valid) / jnp.sum(valid)


if __name__ == "__main__":
    key = jax.random.PRNGKey(0)
    k1, k2, k3, k4 = jax.random.split(key, 4)

    # case 1: small f32 problem with a few ignored positions
    batch, seq, num_classes = 2, 8, 32
    preds = jax.random.normal(k1, (batch, seq, num_classes), dtype=jnp.float32)
    target = jax.random.randint(k2, (batch, seq), 0, num_classes, dtype=jnp.int32)
    target = target.at[0, 0].set(IGNORE_INDEX)
    target = target.at[1, 3].set(IGNORE_INDEX)
    loss = cross_entropy_loss(preds, target)
    jax.block_until_ready(loss)
    ref = _reference(preds, target)
    assert jnp.allclose(loss, ref, rtol=1e-5, atol=1e-5), (loss, ref)

    # case 2: bf16 logits streamed natively (upcast only on the VMEM tile)
    preds_bf16 = preds.astype(jnp.bfloat16)
    loss_bf16 = cross_entropy_loss(preds_bf16, target)
    jax.block_until_ready(loss_bf16)
    ref_bf16 = _reference(preds_bf16, target)
    assert jnp.allclose(loss_bf16, ref_bf16, rtol=1e-3, atol=1e-3), (loss_bf16, ref_bf16)

    # case 3: row count not a multiple of the tile -> exercises the tail mask,
    #         the 2-way partition split, and the clamped out-of-range tile.
    n_rows, nc = 21, 32
    preds_tail = jax.random.normal(k3, (n_rows, nc), dtype=jnp.float32)
    target_tail = jax.random.randint(k4, (n_rows,), 0, nc, dtype=jnp.int32)
    target_tail = target_tail.at[5].set(IGNORE_INDEX)
    loss_tail = cross_entropy_loss(preds_tail, target_tail, tile_n=8)
    jax.block_until_ready(loss_tail)
    ref_tail = _reference(preds_tail, target_tail)
    assert jnp.allclose(loss_tail, ref_tail, rtol=1e-5, atol=1e-5), (loss_tail, ref_tail)

    print("KERNEL_OK")
</pallas_src>

<mosaic_0001>
module attributes {stable_mosaic.version = 11 : i64} {
  func.func @_ce_kernel(%arg0: i32, %arg1: i32, %arg2: memref<16x32xf32, #tpu.memory_space<vmem>>, %arg3: memref<16x1xi32, #tpu.memory_space<vmem>>, %arg4: memref<1x128xf32, #tpu.memory_space<vmem>>, %arg5: memref<1x128xf32, #tpu.memory_space<vmem>>) attributes {dimension_semantics = [#tpu.dimension_semantics<parallel>, #tpu.dimension_semantics<arbitrary>], iteration_bounds = array<i64: 1, 1>, scalar_prefetch = 0 : i64, scratch_operands = 0 : i64, tpu.core_type = #tpu.core_type<tc>, window_params = [{transform_indices = @transform_0, window_bounds = array<i64: 16, 32>}, {transform_indices = @transform_1, window_bounds = array<i64: 16, 1>}, {transform_indices = @transform_2, window_bounds = array<i64: 1, 128>}, {transform_indices = @transform_3, window_bounds = array<i64: 1, 128>}]} {
    %c0_i32 = arith.constant 0 : i32
    %0 = arith.cmpi eq, %arg1, %c0_i32 : i32
    %1 = arith.extui %0 : i1 to i32
    %c0_i32_0 = arith.constant 0 : i32
    %2 = arith.cmpi ne, %1, %c0_i32_0 : i32
    scf.if %2 {
      %cst_18 = arith.constant 0.000000e+00 : f32
      %47 = vector.broadcast %cst_18 : f32 to vector<1x128xf32>
      %c0_19 = arith.constant 0 : index
      %c0_20 = arith.constant 0 : index
      %48 = vector.load %arg4[%c0_19, %c0_20] : memref<1x128xf32, #tpu.memory_space<vmem>>, vector<1x128xf32>
      tpu.vector_store %arg4[%c0_19, %c0_20], %47 {strides = array<i32>} : memref<1x128xf32, #tpu.memory_space<vmem>>, vector<1x128xf32>,
      %cst_21 = arith.constant 0.000000e+00 : f32
      %49 = vector.broadcast %cst_21 : f32 to vector<1x128xf32>
      %c0_22 = arith.constant 0 : index
      %c0_23 = arith.constant 0 : index
      %50 = vector.load %arg5[%c0_22, %c0_23] : memref<1x128xf32, #tpu.memory_space<vmem>>, vector<1x128xf32>
      tpu.vector_store %arg5[%c0_22, %c0_23], %49 {strides = array<i32>} : memref<1x128xf32, #tpu.memory_space<vmem>>, vector<1x128xf32>,
    } else {
    }
    %c0 = arith.constant 0 : index
    %c0_1 = arith.constant 0 : index
    %3 = vector.load %arg2[%c0, %c0_1] : memref<16x32xf32, #tpu.memory_space<vmem>>, vector<16x32xf32>
    %c0_2 = arith.constant 0 : index
    %c0_3 = arith.constant 0 : index
    %4 = vector.load %arg3[%c0_2, %c0_3] : memref<16x1xi32, #tpu.memory_space<vmem>>, vector<16x1xi32>
    %cst = arith.constant dense<0xFF800000> : vector<16xf32>
    %5 = vector.multi_reduction <maximumf>, %3, %cst [1] : vector<16x32xf32> to vector<16xf32>
    %6 = vector.shape_cast %5 : vector<16xf32> to vector<16x1xf32>
    %7 = vector.broadcast %6 : vector<16x1xf32> to vector<16x32xf32>
    %8 = arith.subf %3, %7 : vector<16x32xf32>
    %9 = math.exp %8 : vector<16x32xf32>
    %cst_4 = arith.constant dense<0.000000e+00> : vector<16xf32>
    %10 = vector.multi_reduction <add>, %9, %cst_4 [1] : vector<16x32xf32> to vector<16xf32>
    %11 = vector.shape_cast %10 : vector<16xf32> to vector<16x1xf32>
    %12 = math.log %11 : vector<16x1xf32>
    %13 = arith.addf %12, %6 : vector<16x1xf32>
    %14 = tpu.iota {dimensions = array<i32: 1>} : vector<1x32xi32>
    %15 = vector.broadcast %14 : vector<1x32xi32> to vector<16x32xi32>
    %16 = vector.broadcast %4 : vector<16x1xi32> to vector<16x32xi32>
    %17 = arith.cmpi eq, %15, %16 : vector<16x32xi32>
    %cst_5 = arith.constant 0.000000e+00 : f32
    %18 = vector.broadcast %cst_5 : f32 to vector<16x32xf32>
    %19 = arith.select %17, %3, %18 : vector<16x32xi1>, vector<16x32xf32>
    %cst_6 = arith.constant dense<0.000000e+00> : vector<16xf32>
    %20 = vector.multi_reduction <add>, %19, %cst_6 [1] : vector<16x32xf32> to vector<16xf32>
    %21 = vector.shape_cast %20 : vector<16xf32> to vector<16x1xf32>
    %c-100_i32 = arith.constant -100 : i32
    %22 = vector.broadcast %c-100_i32 : i32 to vector<16x1xi32>
    %23 = arith.cmpi ne, %4, %22 : vector<16x1xi32>
    %24 = arith.subf %13, %21 : vector<16x1xf32>
    %cst_7 = arith.constant 0.000000e+00 : f32
    %25 = vector.broadcast %cst_7 : f32 to vector<16x1xf32>
    %26 = arith.select %23, %24, %25 : vector<16x1xi1>, vector<16x1xf32>
    %27 = arith.extui %23 : vector<16x1xi1> to vector<16x1xi32>
    %28 = arith.sitofp %27 : vector<16x1xi32> to vector<16x1xf32>
    %c0_8 = arith.constant 0 : index
    %c0_9 = arith.constant 0 : index
    %29 = vector.load %arg4[%c0_8, %c0_9] : memref<1x128xf32, #tpu.memory_space<vmem>>, vector<1x128xf32>
    %30 = vector.shape_cast %26 : vector<16x1xf32> to vector<1x16x1xf32>
    %cst_10 = arith.constant dense<0.000000e+00> : vector<1xf32>
    %31 = vector.multi_reduction <add>, %30, %cst_10 [1, 2] : vector<1x16x1xf32> to vector<1xf32>
    %32 = vector.shape_cast %31 : vector<1xf32> to vector<1x1x1xf32>
    %33 = vector.extract %32[0, 0, 0] : f32 from vector<1x1x1xf32>
    %34 = vector.broadcast %33 : f32 to vector<1x1xf32>
    %35 = vector.broadcast %34 : vector<1x1xf32> to vector<1x128xf32>
    %36 = arith.addf %29, %35 : vector<1x128xf32>
    %c0_11 = arith.constant 0 : index
    %c0_12 = arith.constant 0 : index
    %37 = vector.load %arg4[%c0_11, %c0_12] : memref<1x128xf32, #tpu.memory_space<vmem>>, vector<1x128xf32>
    tpu.vector_store %arg4[%c0_11, %c0_12], %36 {strides = array<i32>} : memref<1x128xf32, #tpu.memory_space<vmem>>, vector<1x128xf32>,
    %c0_13 = arith.constant 0 : index
    %c0_14 = arith.constant 0 : index
    %38 = vector.load %arg5[%c0_13, %c0_14] : memref<1x128xf32, #tpu.memory_space<vmem>>, vector<1x128xf32>
    %39 = vector.shape_cast %28 : vector<16x1xf32> to vector<1x16x1xf32>
    %cst_15 = arith.constant dense<0.000000e+00> : vector<1xf32>
    %40 = vector.multi_reduction <add>, %39, %cst_15 [1, 2] : vector<1x16x1xf32> to vector<1xf32>
    %41 = vector.shape_cast %40 : vector<1xf32> to vector<1x1x1xf32>
    %42 = vector.extract %41[0, 0, 0] : f32 from vector<1x1x1xf32>
    %43 = vector.broadcast %42 : f32 to vector<1x1xf32>
    %44 = vector.broadcast %43 : vector<1x1xf32> to vector<1x128xf32>
    %45 = arith.addf %38, %44 : vector<1x128xf32>
    %c0_16 = arith.constant 0 : index
    %c0_17 = arith.constant 0 : index
    %46 = vector.load %arg5[%c0_16, %c0_17] : memref<1x128xf32, #tpu.memory_space<vmem>>, vector<1x128xf32>
    tpu.vector_store %arg5[%c0_16, %c0_17], %45 {strides = array<i32>} : memref<1x128xf32, #tpu.memory_space<vmem>>, vector<1x128xf32>,
    return
  }
  func.func @transform_0(%arg0: i32, %arg1: i32) -> (i32, i32) {
    %c1_i32 = arith.constant 1 : i32
    %0 = arith.muli %arg0, %c1_i32 : i32
    %1 = arith.addi %0, %arg1 : i32
    %c0_i32 = arith.constant 0 : i32
    %2 = arith.minsi %1, %c0_i32 : i32
    %c0_i32_0 = arith.constant 0 : i32
    %c0_i32_1 = arith.constant 0 : i32
    return %2, %c0_i32_0 : i32, i32
  }
  func.func @transform_1(%arg0: i32, %arg1: i32) -> (i32, i32) {
    %c1_i32 = arith.constant 1 : i32
    %0 = arith.muli %arg0, %c1_i32 : i32
    %1 = arith.addi %0, %arg1 : i32
    %c0_i32 = arith.constant 0 : i32
    %2 = arith.minsi %1, %c0_i32 : i32
    %c0_i32_0 = arith.constant 0 : i32
    %c0_i32_1 = arith.constant 0 : i32
    return %2, %c0_i32_0 : i32, i32
  }
  func.func @transform_2(%arg0: i32, %arg1: i32) -> (i32, i32) {
    %c0_i32 = arith.constant 0 : i32
    %c0_i32_0 = arith.constant 0 : i32
    return %c0_i32, %arg0 : i32, i32
  }
  func.func @transform_3(%arg0: i32, %arg1: i32) -> (i32, i32) {
    %c0_i32 = arith.constant 0 : i32
    %c0_i32_0 = arith.constant 0 : i32
    return %c0_i32, %arg0 : i32, i32
  }
}

</mosaic_0001>

<llo_original>
// kernel: tpu_custom_call.1
$region0: #{tpu_custom_call.1}
  #allocation0 [shape = 'u32[]', space=smem, size = 0x4, offset = 0x4, fixed_abs, tag = 'smem constant byte address 0x4 - core index']
  #allocation1 [shape = 'u32[72,128]{1,0:T(1,128)}', space=vmem, size = 0x9000, scoped, tag = 'internal scratch']
  %s0 = inlined_call_operand.vmem [shape: f32[16,32], index: 0, kind: input, shape index: {}]
  %s1 = inlined_call_operand.vmem [shape: s32[16,1], index: 1, kind: input, shape index: {}]
  %s2 = inlined_call_operand.hbm [shape: f32[1,128], index: 2, kind: output, shape index: {0}]
  %s3 = inlined_call_operand.hbm [shape: f32[1,128], index: 3, kind: output, shape index: {1}]
  %4 = xla_tuple %s2, %s3
  %s5 = sld [smem:[#allocation0]]
  $region30: #{tpu_custom_call.1} parent=0
    _
  %s7 = ssub.s32 1, %s5
  %s8 = scalar_select 0, %s7, %s5
  $region1: #{tpu_custom_call.1} parent=0
    #allocation2 [shape = 'u8[512]{0}', space=vmem, size = 0x400, scoped, tag = 'output window, operand 0, single buffered']
    #allocation3 [shape = 's32[1]{0}', space=sflag, size = 0x4, scoped, tag = 'scoped memory for tpu_custom_call.1']
    #allocation4 [shape = 'u8[512]{0}', space=vmem, size = 0x400, scoped, tag = 'output window, operand 1, single buffered']
    #allocation5 [shape = 's32[1]{0}', space=sflag, size = 0x4, scoped, tag = 'scoped memory for tpu_custom_call.1']
    %9 = vsyncpa [#allocation3], 0
    %10 = vsyncpa [#allocation5], 0
    // Predicated region
    $region2: #{tpu_custom_call.1} parent=1 // pred_check
      _
    $region3: #{tpu_custom_call.1} parent=1 // pred_check_branch
      %12 = sbr.rel (0) target = $region5
    $region4: #{tpu_custom_call.1} parent=1 // pred_region
      %s13 = sadd.s32 0, 0
      %p14 = scmp.lt.s32.totalorder %s13, 0
      %s15 = scalar_select %p14, %s13, 0
      %s16 = smul.u32 2, %s15
      %p17 = scmp.lt.s32.totalorder %s16, 1
      %s18 = scalar_select %p17, %s16, 1
      %s19 = smul.addr %s18, 8
      %s20 = scalar_lea.vmem %s0, %s19
      %s21 = sadd.s32 0, 0
      %p22 = scmp.lt.s32.totalorder %s21, 0
      %s23 = scalar_select %p22, %s21, 0
      %s24 = smul.u32 2, %s23
    $region5: #{tpu_custom_call.1} parent=1 // pred_fallthru
      _
    // Predicated region
    $region6: #{tpu_custom_call.1} parent=1 // pred_check
      _
    $region7: #{tpu_custom_call.1} parent=1 // pred_check_branch
      %26 = sbr.rel (0) target = $region9
    $region8: #{tpu_custom_call.1} parent=1 // pred_region
      %s27 = sadd.s32 0, 0
      %p28 = scmp.lt.s32.totalorder %s27, 0
      %s29 = scalar_select %p28, %s27, 0
      %s30 = smul.u32 2, %s29
      %p31 = scmp.lt.s32.totalorder %s30, 1
      %s32 = scalar_select %p31, %s30, 1
      %s33 = smul.addr %s32, 8
      %s34 = scalar_lea.vmem %s1, %s33
      %s35 = sadd.s32 0, 0
      %p36 = scmp.lt.s32.totalorder %s35, 0
      %s37 = scalar_select %p36, %s35, 0
      %s38 = smul.u32 2, %s37
    $region9: #{tpu_custom_call.1} parent=1 // pred_fallthru
      _
    %s39 = sadd.s32 0, 0
    %p40 = scmp.lt.s32.totalorder %s39, 0
    %s41 = scalar_select %p40, %s39, 0
    %s42 = smul.u32 2, %s41
    %p43 = scmp.lt.s32.totalorder %s42, 1
    %s44 = scalar_select %p43, %s42, 1
    %s45 = smul.addr %s44, 8
    %s46 = scalar_lea.vmem %s0, %s45
    %s47 = sadd.s32 0, 0
    %p48 = scmp.lt.s32.totalorder %s47, 0
    %s49 = scalar_select %p48, %s47, 0
    %s50 = smul.u32 2, %s49
    %p51 = scmp.lt.s32.totalorder %s50, 1
    %s52 = scalar_select %p51, %s50, 1
    %s53 = smul.addr %s52, 8
    %s54 = scalar_lea.vmem %s1, %s53
    %s55 = sadd.s32 0, 0
    %p56 = scmp.lt.s32.totalorder %s55, 0
    %s57 = scalar_select %p56, %s55, 0
    %s58 = smul.u32 2, %s57
    %p59 = scmp.lt.s32.totalorder %s58, 1
    %s60 = scalar_select %p59, %s58, 1
    %s61 = smul.addr %s60, 8
    %s62 = scalar_lea.vmem %s0, %s61
    %s63 = sadd.s32 0, 0
    %p64 = scmp.lt.s32.totalorder %s63, 0
    %s65 = scalar_select %p64, %s63, 0
    %s66 = smul.u32 2, %s65
    %s67 = sadd.s32 0, 0
    %p68 = scmp.lt.s32.totalorder %s67, 0
    %s69 = scalar_select %p68, %s67, 0
    %s70 = smul.u32 2, %s69
    %p71 = scmp.lt.s32.totalorder %s70, 1
    %s72 = scalar_select %p71, %s70, 1
    %s73 = smul.addr %s72, 8
    %s74 = scalar_lea.vmem %s1, %s73
    %s75 = sadd.s32 0, 0
    %p76 = scmp.lt.s32.totalorder %s75, 0
    %s77 = scalar_select %p76, %s75, 0
    %s78 = smul.u32 2, %s77
    %p79 = scmp.eq.s32.totalorder 0, 0
    // Predicated region
    $region10: #{tpu_custom_call.1} parent=1 // pred_check
      %p80 = pneg %p79
    $region11: #{tpu_custom_call.1} parent=1 // pred_check_branch
      %82 = sbr.rel (%p80) target = $region13
    $region12: #{tpu_custom_call.1} parent=1 // pred_region
      %83 = vst [vmem:[#allocation2] sm:$0x1] 0.0
      %84 = vst [vmem:[#allocation4] sm:$0x1] 0.0
    $region13: #{tpu_custom_call.1} parent=1 // pred_fallthru
      _
    %v85 = vld [vmem:[%s62] sm:$0xff]
    %v86 = vld [vmem:[%s62 + $0x8] sm:$0xff]
    %v87 = vld [vmem:[%s74] sm:$0xff]
    %v88 = vld [vmem:[%s74 + $0x8] sm:$0xff]
    %vm89 = vcmask 261120
    %v90 = vsel %vm89, %v85, -inf
    %91 = vmax.xlane.f32.xlu0 %v90
    %v92 = vpop.xlane.xlu0 %91
    %v93 = vsel %vm89, %v86, -inf
    %94 = vmax.xlane.f32.xlu0 %v93
    %v95 = vpop.xlane.xlu0 %94
    %v96 = vsub.f32 %v85, %v92
    %v97 = vsub.f32 %v86, %v95
    %v98 = vmul.f32 %v96, 1.442695
    %v99 = vpow.pop %v98
    %v100 = vmul.f32 %v97, 1.442695
    %v101 = vpow.pop %v100
    %v102 = vsel %vm89, %v99, 0.0
    %103 = vadd.xlane.f32.xlu0 %v102
    %v104 = vpop.xlane.xlu0 %103
    %v105 = vsel %vm89, %v101, 0.0
    %106 = vadd.xlane.f32.xlu0 %v105
    %v107 = vpop.xlane.xlu0 %106
    %v108 = vlog2.pop %v104
    %v109 = vmul.f32 %v108, 0.6931472
    %v110 = vlog2.pop %v107
    %v111 = vmul.f32 %v110, 0.6931472
    %v112 = vadd.f32 %v109, %v92
    %v113 = vadd.f32 %v111, %v95
    %v114 = vlaneseq
    %v115 = vand.u32 %v114, 127
    %116 = vset.pattern.permute.xlu0 0
    %117 = vperm.xlu0 %116, %v87
    %v118 = vpop.permute.xlu0 %117
    %119 = vset.pattern.permute.xlu0 0
    %120 = vperm.xlu0 %119, %v88
    %v121 = vpop.permute.xlu0 %120
    %vm122 = vcmp.eq.s32.totalorder %v115, %v118
    %vm123 = vcmp.eq.s32.totalorder %v115, %v121
    %v124 = vsel %vm122, %v85, 0.0
    %v125 = vsel %vm123, %v86, 0.0
    %v126 = vsel %vm89, %v124, 0.0
    %127 = vadd.xlane.f32.xlu0 %v126
    %v128 = vpop.xlane.xlu0 %127
    %v129 = vsel %vm89, %v125, 0.0
    %130 = vadd.xlane.f32.xlu0 %v129
    %v131 = vpop.xlane.xlu0 %130
    %vm132 = vcmp.ne.s32.totalorder %v87, 4294967196
    %vm133 = vcmp.ne.s32.totalorder %v88, 4294967196
    %v134 = vsub.f32 %v112, %v128
    %v135 = vsub.f32 %v113, %v131
    %v136 = vsel %vm132, %v134, 0.0
    %v137 = vsel %vm133, %v135, 0.0
    %v138 = vsel %vm132, 1, 0
    %v139 = vsel %vm133, 1, 0
    %v140 = vcvt.s32.f32 %v138
    %v141 = vcvt.s32.f32 %v139
    %v142 = vld [vmem:[#allocation2] sm:$0x1]
    %vm143 = vcmask 7168
    %v144 = vsel %vm143, %v136, 0.0
    %v145 = vsel %vm143, %v137, 0.0
    %v146 = vadd.f32 %v144, %v145
    %147 = vadd.xlane.f32.xlu0 %v146
    %v148 = vpop.xlane.xlu0 %147
    %v149 = vrot.slane %v148, 4
    %v150 = vadd.f32 %v148, %v149
    %v151 = vrot.slane %v150, 2
    %v152 = vadd.f32 %v150, %v151
    %v153 = vrot.slane %v152, 1
    %v154 = vadd.f32 %v152, %v153
    %s155 = vtos %v154
    %v156 = vstv %s155
    %v157 = vadd.f32 %v142, %v156
    %158 = vst [vmem:[#allocation2] sm:$0x1] %v157
    %v159 = vld [vmem:[#allocation4] sm:$0x1]
    %v160 = vsel %vm143, %v140, 0.0
    %v161 = vsel %vm143, %v141, 0.0
    %v162 = vadd.f32 %v160, %v161
    %163 = vadd.xlane.f32.xlu0 %v162
    %v164 = vpop.xlane.xlu0 %163
    %v165 = vrot.slane %v164, 4
    %v166 = vadd.f32 %v164, %v165
    %v167 = vrot.slane %v166, 2
    %v168 = vadd.f32 %v166, %v167
    %v169 = vrot.slane %v168, 1
    %v170 = vadd.f32 %v168, %v169
    %s171 = vtos %v170
    %v172 = vstv %s171
    %v173 = vadd.f32 %v159, %v172
    %174 = vst [vmem:[#allocation4] sm:$0x1] %v173
    // Predicated region
    $region14: #{tpu_custom_call.1} parent=1 // pred_check
      _
    $region15: #{tpu_custom_call.1} parent=1 // pred_check_branch
      %176 = sbr.rel (0) target = $region17
    $region16: #{tpu_custom_call.1} parent=1 // pred_region
      %178 = vsyncadd [#allocation3], 0
      %s180 = sshll.u32 [#allocation2], 4
      %s181 = int_to_ptr.vmem [resolvable:$true] %s180
      %s182 = sshll.u32 %s2, 4
      %s183 = int_to_ptr.hbm [resolvable:$true] %s182
      %185 = dma.vmem_to_hbm [thread:$0]  %s181, 16, %s183, [#allocation3]
    $region17: #{tpu_custom_call.1} parent=1 // pred_fallthru
      _
    // Predicated region
    $region18: #{tpu_custom_call.1} parent=1 // pred_check
      _
    $region19: #{tpu_custom_call.1} parent=1 // pred_check_branch
      %187 = sbr.rel (0) target = $region21
    $region20: #{tpu_custom_call.1} parent=1 // pred_region
      %189 = vsyncadd [#allocation5], 0
      %s191 = sshll.u32 [#allocation4], 4
      %s192 = int_to_ptr.vmem [resolvable:$true] %s191
      %s193 = sshll.u32 %s3, 4
      %s194 = int_to_ptr.hbm [resolvable:$true] %s193
      %196 = dma.vmem_to_hbm [thread:$0]  %s192, 16, %s194, [#allocation5]
    $region21: #{tpu_custom_call.1} parent=1 // pred_fallthru
      _
    // Predicated region
    $region22: #{tpu_custom_call.1} parent=1 // pred_check
      _
    $region23: #{tpu_custom_call.1} parent=1 // pred_check_branch
      %198 = sbr.rel (0) target = $region25
    $region24: #{tpu_custom_call.1} parent=1 // pred_region
      %200 = dma.done [#allocation3], 16
    $region25: #{tpu_custom_call.1} parent=1 // pred_fallthru
      _
    // Predicated region
    $region26: #{tpu_custom_call.1} parent=1 // pred_check
      _
    $region27: #{tpu_custom_call.1} parent=1 // pred_check_branch
      %202 = sbr.rel (0) target = $region29
    $region28: #{tpu_custom_call.1} parent=1 // pred_region
      %204 = dma.done [#allocation5], 16
    $region29: #{tpu_custom_call.1} parent=1 // pred_fallthru
      _
    %205 = vsyncpa [#allocation3], 1
    %206 = vsyncpa [#allocation5], 1

</llo_original>
